<compile_context>
chip_gen: v7x
topology: tpu7x:2x2x1
jax: 0.10.0
libtpu: 0.0.40
codegen_flags: <defaults>
</compile_context>

<pallas_src>
import math

import jax
import jax.numpy as jnp
from jax.experimental import pallas as pl
from jax.experimental.pallas import tpu as pltpu


def lsa_kernel(q_ref, mem_ref, pmem_ref, xunf_ref, mask_ref,
               wqt_ref, wc_ref, wv_ref,
               ctx_ref, aw_ref):
    # Per grid step (Bblk batch elements):
    #   q_ref    : (Bblk, 1, Q)        decoder queries
    #   mem_ref  : (Bblk, E, Tp)       encoder outputs ("memories"), T padded
    #   pmem_ref : (Bblk, A, Tp)       processed memories
    #   xunf_ref : (Bblk, 2K, Tp)      im2col of [prev; cumulative] alignments
    #   mask_ref : (Bblk, 1, Tp)       1.0 where padded/masked, 0.0 otherwise
    #   wqt_ref  : (Q, A)              query 1x1-conv weight, transposed
    #   wc_ref   : (A, 2K)             fused location-layer weight (wl2 @ wl1)
    #   wv_ref   : (A, 1)              v 1x1-conv weight (column)
    #   ctx_ref  : (Bblk, 1, Epad)     attention context (lane-padded to 128)
    #   aw_ref   : (Bblk, 1, Tp)       attention weights
    Bblk, A, Tp = pmem_ref.shape
    E = mem_ref.shape[1]
    Epad = ctx_ref.shape[-1]
    K2 = wc_ref.shape[1]

    # processed_query: one M=Bblk matmul  (Bblk, Q) @ (Q, A) -> (Bblk, A)
    q = q_ref[:, 0, :]
    pq = jnp.dot(q, wqt_ref[...], preferred_element_type=jnp.float32)

    # fused location layer: conv(K=31) o conv(1x1) collapsed into one (A, 2K)
    # weight, applied as a single batched matmul on the im2col'd alignments.
    x = xunf_ref[...]                                              # (Bblk, 2K, Tp)
    wc_b = jnp.broadcast_to(wc_ref[...][None], (Bblk, A, K2))      # tiny broadcast
    patt = jax.lax.dot_general(
        wc_b, x, (((2,), (1,)), ((0,), (0,))),
        preferred_element_type=jnp.float32)                        # (Bblk, A, Tp)

    # energies = v . tanh(pq + patt + processed_memory)
    # (VPU/XLU broadcast-multiply + sublane reduce; avoids M=1 MXU pushes)
    e = jnp.tanh(pq[:, :, None] + patt + pmem_ref[...].astype(jnp.float32))
    wv = wv_ref[...][None, :, :]                                   # (1, A, 1)
    energies = jnp.sum(wv * e, axis=1)                             # (Bblk, Tp)

    # masked_fill_(mask, -finfo.max) + softmax over T
    neg = -jnp.finfo(jnp.float32).max
    energies = jnp.where(mask_ref[:, 0, :] > 0.5, neg, energies)
    m = jnp.max(energies, axis=-1, keepdims=True)
    p = jnp.exp(energies - m)
    aw = p * pl.reciprocal(jnp.sum(p, axis=-1, keepdims=True), approx=True)

    # attention_context[b, e] = sum_t mem[b, e, t] * aw[b, t]   (lane reduce)
    ctx = jnp.sum(mem_ref[...].astype(jnp.float32) * aw[:, None, :], axis=-1)

    # lane-dense output stores
    aw_ref[...] = aw[:, None, :].astype(aw_ref.dtype)
    if Epad > E:
        ctx = jnp.concatenate(
            [ctx, jnp.zeros((Bblk, Epad - E), jnp.float32)], axis=-1)
    ctx_ref[...] = ctx[:, None, :].astype(ctx_ref.dtype)


def location_sensitive_attention(query, memories, processed_memories,
                                 previous_alignments, cumulated_alignments,
                                 masks, params, block_b=None,
                                 stream_dtype=jnp.float32):
    # stream_dtype=jnp.bfloat16 is a valid option on v6e/v7x to halve HBM bytes
    # of the two largest inputs; default f32 keeps v5e behavior / strict accuracy.
    B, Q = query.shape
    _, E, T = memories.shape
    A = params["wq"].shape[0]
    F, _, K = params["wl1"].shape
    pad = (K - 1) // 2
    Epad = ((E + 127) // 128) * 128
    Tpad = ((T + 127) // 128) * 128

    # batch blocking: amortize per-step overhead; keep >=2 grid steps when
    # possible so v7x's two TensorCores both get work.
    if block_b is None:
        block_b = 1 if B <= 1 else max(1, min(8, B // 2))
    block_b = max(1, min(block_b, B))
    nblk = pl.cdiv(B, block_b)
    Bp = nblk * block_b

    # --- glue (plain JAX) ---------------------------------------------------
    # im2col of [prev; cumulative] alignments for the fused location matmul.
    att_cat = jnp.stack([previous_alignments, cumulated_alignments], axis=1)  # (B,2,T)
    att_pad = jnp.pad(att_cat, ((0, 0), (0, 0), (pad, pad)))                  # (B,2,T+K-1)
    idx = jnp.arange(K)[:, None] + jnp.arange(T)[None, :]                     # (K, T)
    x_unf = att_pad[:, :, idx].reshape(B, 2 * K, T)                           # (B,2K,T)

    # fuse both (bias-free, linear) location convs into one (A, 2K) weight.
    wc = jnp.dot(params["wl2"], params["wl1"].reshape(F, 2 * K))              # (A,2K)
    wqt = params["wq"].T                                                      # (Q,A)
    wv_col = params["wv"].reshape(A, 1)                                       # (A,1)

    q3 = query.reshape(B, 1, Q)
    mem_s = memories.astype(stream_dtype)
    pmem_s = processed_memories.astype(stream_dtype)

    if masks is None:
        masks = jnp.zeros((B, T), bool)

    # pad batch to Bp and time to Tpad (zeros; padded positions are masked).
    def pad_bt(x):
        return jnp.pad(x, ((0, Bp - B), (0, 0), (0, Tpad - x.shape[-1])))

    mem_s, pmem_s, x_unf = map(pad_bt, (mem_s, pmem_s, x_unf))
    q3 = jnp.pad(q3, ((0, Bp - B), (0, 0), (0, 0)))

    # mask: 1.0 everywhere that is padded (batch rows, time tail) or masked.
    mask_full = jnp.ones((Bp, 1, Tpad), jnp.float32)
    mask_full = mask_full.at[:B, :, :T].set(
        masks.astype(jnp.float32).reshape(B, 1, T))

    ctx_p, aw_p = pl.pallas_call(
        lsa_kernel,
        out_shape=(jax.ShapeDtypeStruct((Bp, 1, Epad), jnp.float32),
                   jax.ShapeDtypeStruct((Bp, 1, Tpad), jnp.float32)),
        grid=(nblk,),
        in_specs=[
            pl.BlockSpec((block_b, 1, Q), lambda i: (i, 0, 0)),        # query
            pl.BlockSpec((block_b, E, Tpad), lambda i: (i, 0, 0)),     # memories
            pl.BlockSpec((block_b, A, Tpad), lambda i: (i, 0, 0)),     # processed mem
            pl.BlockSpec((block_b, 2 * K, Tpad), lambda i: (i, 0, 0)), # im2col align.
            pl.BlockSpec((block_b, 1, Tpad), lambda i: (i, 0, 0)),     # mask
            pl.BlockSpec((Q, A), lambda i: (0, 0)),                    # Wq^T
            pl.BlockSpec((A, 2 * K), lambda i: (0, 0)),                # fused Wloc
            pl.BlockSpec((A, 1), lambda i: (0, 0)),                    # Wv
        ],
        out_specs=(pl.BlockSpec((block_b, 1, Epad), lambda i: (i, 0, 0)),
                   pl.BlockSpec((block_b, 1, Tpad), lambda i: (i, 0, 0))),
        compiler_params=pltpu.CompilerParams(dimension_semantics=("parallel",)),
    )(q3, mem_s, pmem_s, x_unf, mask_full, wqt, wc, wv_col)

    return ctx_p[:B, 0, :E], aw_p[:B, 0, :T]


# ---------------------- deterministic parameter init ----------------------
def _xavier_uniform(key, shape, gain):
    # Conv1d weight shape (out, in, k): fan_in = in*k, fan_out = out*k
    out_c, in_c = shape[0], shape[1]
    rf = 1
    for s in shape[2:]:
        rf *= s
    bound = gain * math.sqrt(6.0 / (in_c * rf + out_c * rf))
    return jax.random.uniform(key, shape, jnp.float32, -bound, bound)


def init_params(key, query_size, encoding_size, attention_size,
                n_filters=32, kernel_size=31):
    g_tanh = 5.0 / 3.0
    ks = jax.random.split(key, 5)
    wq = _xavier_uniform(ks[0], (attention_size, query_size, 1), g_tanh)[:, :, 0]
    wmem = _xavier_uniform(ks[1], (attention_size, encoding_size, 1), g_tanh)[:, :, 0]
    wl1 = _xavier_uniform(ks[2], (n_filters, 2, kernel_size), 1.0)
    wl2 = _xavier_uniform(ks[3], (attention_size, n_filters, 1), g_tanh)[:, :, 0]
    wv = _xavier_uniform(ks[4], (1, attention_size, 1), 1.0)[:, :, 0]
    return {"wq": wq, "wmem": wmem, "wl1": wl1, "wl2": wl2, "wv": wv}


# ---------------------- pure-JAX reference (for checking) ----------------------
def reference(query, memories, processed_memories, prev, cum, masks, params):
    wl1 = params["wl1"]                                    # (F, 2, K)
    K = wl1.shape[2]
    pad = (K - 1) // 2
    att_cat = jnp.stack([prev, cum], axis=1)               # (B, 2, T)
    loc = jax.lax.conv_general_dilated(
        att_cat, wl1, window_strides=(1,), padding=[(pad, pad)],
        dimension_numbers=("NCH", "OIH", "NCH"))           # (B, F, T)
    patt = jnp.einsum("af,bft->bat", params["wl2"], loc)
    pq = jnp.einsum("aq,bq->ba", params["wq"], query)[:, :, None]
    energies = jnp.einsum("oa,bat->bot", params["wv"],
                          jnp.tanh(pq + patt + processed_memories))  # (B,1,T)
    energies = jnp.where(masks[:, None, :], -jnp.finfo(jnp.float32).max, energies)
    aw = jax.nn.softmax(energies, axis=2)                  # (B, 1, T)
    ctx = jnp.einsum("bet,bot->be", memories, aw)
    return ctx, aw[:, 0, :]


def _run_case(key, B, Q, E, A, T, F, K, block_b=None):
    kp, kq, km, ka, kc = jax.random.split(key, 5)
    params = init_params(kp, Q, E, A, F, K)

    query = jax.random.normal(kq, (B, Q), jnp.float32)
    memories = jax.random.normal(km, (B, E, T), jnp.float32)
    # processed_memories = self.memory(memories) (1x1 conv), computed as glue here
    processed_memories = jnp.einsum("ae,bet->bat", params["wmem"], memories)

    prev_raw = jax.random.uniform(ka, (B, T), jnp.float32)
    previous_alignments = prev_raw / jnp.sum(prev_raw, axis=-1, keepdims=True)
    cumulated_alignments = jax.random.uniform(kc, (B, T), jnp.float32)

    # mask out the tail of each sequence except the first (True = padded position)
    lengths = jnp.array([T - 8 * i for i in range(B)])[:, None]
    lengths = jnp.maximum(lengths, 8)
    masks = jnp.arange(T)[None, :] >= lengths                       # (B, T) bool

    ctx, aw = location_sensitive_attention(
        query, memories, processed_memories,
        previous_alignments, cumulated_alignments, masks, params,
        block_b=block_b)
    jax.block_until_ready((ctx, aw))

    ctx_ref, aw_ref = reference(query, memories, processed_memories,
                                previous_alignments, cumulated_alignments,
                                masks, params)
    assert ctx.shape == (B, E) and aw.shape == (B, T)
    assert jnp.allclose(ctx, ctx_ref, atol=2e-3, rtol=2e-3)
    assert jnp.allclose(aw, aw_ref, atol=2e-3, rtol=2e-3)


if __name__ == "__main__":
    key = jax.random.PRNGKey(0)
    k1, k2 = jax.random.split(key)

    # aligned case (T multiple of 128, even batch)
    _run_case(k1, B=2, Q=16, E=16, A=32, T=128, F=32, K=31)
    # ragged case: exercises time padding (T=100 -> 128) and batch padding (B=3 -> 4)
    _run_case(k2, B=3, Q=16, E=16, A=32, T=100, F=32, K=31, block_b=2)

    print("KERNEL_OK")
</pallas_src>

<mosaic_0001>
module attributes {stable_mosaic.version = 11 : i64} {
  func.func @lsa_kernel(%arg0: i32, %arg1: memref<1x1x16xf32, #tpu.memory_space<vmem>>, %arg2: memref<1x16x128xf32, #tpu.memory_space<vmem>>, %arg3: memref<1x32x128xf32, #tpu.memory_space<vmem>>, %arg4: memref<1x62x128xf32, #tpu.memory_space<vmem>>, %arg5: memref<1x1x128xf32, #tpu.memory_space<vmem>>, %arg6: memref<16x32xf32, #tpu.memory_space<vmem>>, %arg7: memref<32x62xf32, #tpu.memory_space<vmem>>, %arg8: memref<32x1xf32, #tpu.memory_space<vmem>>, %arg9: memref<1x1x128xf32, #tpu.memory_space<vmem>>, %arg10: memref<1x1x128xf32, #tpu.memory_space<vmem>>) attributes {dimension_semantics = [#tpu.dimension_semantics<parallel>], iteration_bounds = array<i64: 2>, scalar_prefetch = 0 : i64, scratch_operands = 0 : i64, tpu.core_type = #tpu.core_type<tc>, window_params = [{transform_indices = @transform_0, window_bounds = array<i64: 1, 1, 16>}, {transform_indices = @transform_1, window_bounds = array<i64: 1, 16, 128>}, {transform_indices = @transform_2, window_bounds = array<i64: 1, 32, 128>}, {transform_indices = @transform_3, window_bounds = array<i64: 1, 62, 128>}, {transform_indices = @transform_4, window_bounds = array<i64: 1, 1, 128>}, {pipeline_mode = #tpu.pipeline_mode<synchronous>, transform_indices = @transform_5, window_bounds = array<i64: 16, 32>}, {pipeline_mode = #tpu.pipeline_mode<synchronous>, transform_indices = @transform_6, window_bounds = array<i64: 32, 62>}, {pipeline_mode = #tpu.pipeline_mode<synchronous>, transform_indices = @transform_7, window_bounds = array<i64: 32, 1>}, {transform_indices = @transform_8, window_bounds = array<i64: 1, 1, 128>}, {transform_indices = @transform_9, window_bounds = array<i64: 1, 1, 128>}]} {
    %c0 = arith.constant 0 : index
    %c0_0 = arith.constant 0 : index
    %c0_1 = arith.constant 0 : index
    %0 = vector.load %arg1[%c0, %c0_0, %c0_1] : memref<1x1x16xf32, #tpu.memory_space<vmem>>, vector<1x1x16xf32>
    %1 = vector.shape_cast %0 : vector<1x1x16xf32> to vector<1x16xf32>
    %c0_2 = arith.constant 0 : index
    %c0_3 = arith.constant 0 : index
    %2 = vector.load %arg6[%c0_2, %c0_3] : memref<16x32xf32, #tpu.memory_space<vmem>>, vector<16x32xf32>
    %cst = arith.constant dense<0.000000e+00> : vector<1x32xf32>
    %3 = tpu.matmul %1, %2, %cst {dimension_numbers = #tpu.dot_dimension_numbers<[1], [0], [0], [1], [0, 0, 1, 1], [], []>} : vector<1x16xf32>, vector<16x32xf32>, vector<1x32xf32> -> vector<1x32xf32>
    %c0_4 = arith.constant 0 : index
    %c0_5 = arith.constant 0 : index
    %c0_6 = arith.constant 0 : index
    %4 = vector.load %arg4[%c0_4, %c0_5, %c0_6] : memref<1x62x128xf32, #tpu.memory_space<vmem>>, vector<1x62x128xf32>
    %c0_7 = arith.constant 0 : index
    %c0_8 = arith.constant 0 : index
    %5 = vector.load %arg7[%c0_7, %c0_8] : memref<32x62xf32, #tpu.memory_space<vmem>>, vector<32x62xf32>
    %6 = vector.shape_cast %5 : vector<32x62xf32> to vector<1x32x62xf32>
    %cst_9 = arith.constant dense<0.000000e+00> : vector<1x32x128xf32>
    %7 = tpu.matmul %6, %4, %cst_9 {dimension_numbers = #tpu.dot_dimension_numbers<[2], [1], [1], [2], [0, 0, 0, 1, 1, 2], [0], [0]>} : vector<1x32x62xf32>, vector<1x62x128xf32>, vector<1x32x128xf32> -> vector<1x32x128xf32>
    %8 = vector.shape_cast %3 : vector<1x32xf32> to vector<1x32x1xf32>
    %9 = vector.broadcast %8 : vector<1x32x1xf32> to vector<1x32x128xf32>
    %10 = arith.addf %9, %7 : vector<1x32x128xf32>
    %c0_10 = arith.constant 0 : index
    %c0_11 = arith.constant 0 : index
    %c0_12 = arith.constant 0 : index
    %11 = vector.load %arg3[%c0_10, %c0_11, %c0_12] : memref<1x32x128xf32, #tpu.memory_space<vmem>>, vector<1x32x128xf32>
    %12 = arith.addf %10, %11 : vector<1x32x128xf32>
    %13 = math.tanh %12 : vector<1x32x128xf32>
    %c0_13 = arith.constant 0 : index
    %c0_14 = arith.constant 0 : index
    %14 = vector.load %arg8[%c0_13, %c0_14] : memref<32x1xf32, #tpu.memory_space<vmem>>, vector<32x1xf32>
    %15 = vector.shape_cast %14 : vector<32x1xf32> to vector<1x32x1xf32>
    %16 = vector.broadcast %15 : vector<1x32x1xf32> to vector<1x32x128xf32>
    %17 = arith.mulf %16, %13 : vector<1x32x128xf32>
    %cst_15 = arith.constant dense<0.000000e+00> : vector<1x128xf32>
    %18 = vector.multi_reduction <add>, %17, %cst_15 [1] : vector<1x32x128xf32> to vector<1x128xf32>
    %c0_16 = arith.constant 0 : index
    %c0_17 = arith.constant 0 : index
    %c0_18 = arith.constant 0 : index
    %19 = vector.load %arg5[%c0_16, %c0_17, %c0_18] : memref<1x1x128xf32, #tpu.memory_space<vmem>>, vector<1x1x128xf32>
    %20 = vector.shape_cast %19 : vector<1x1x128xf32> to vector<1x128xf32>
    %cst_19 = arith.constant 5.000000e-01 : f32
    %21 = vector.broadcast %cst_19 : f32 to vector<1x128xf32>
    %22 = arith.cmpf ogt, %20, %21 : vector<1x128xf32>
    %cst_20 = arith.constant -3.40282347E+38 : f32
    %23 = vector.broadcast %cst_20 : f32 to vector<1x128xf32>
    %24 = arith.select %22, %23, %18 : vector<1x128xi1>, vector<1x128xf32>
    %cst_21 = arith.constant dense<0xFF800000> : vector<1xf32>
    %25 = vector.multi_reduction <maximumf>, %24, %cst_21 [1] : vector<1x128xf32> to vector<1xf32>
    %26 = vector.shape_cast %25 : vector<1xf32> to vector<1x1xf32>
    %27 = vector.broadcast %26 : vector<1x1xf32> to vector<1x128xf32>
    %28 = arith.subf %24, %27 : vector<1x128xf32>
    %29 = math.exp %28 : vector<1x128xf32>
    %cst_22 = arith.constant dense<0.000000e+00> : vector<1xf32>
    %30 = vector.multi_reduction <add>, %29, %cst_22 [1] : vector<1x128xf32> to vector<1xf32>
    %31 = vector.shape_cast %30 : vector<1xf32> to vector<1x1xf32>
    %32 = tpu.reciprocal %31 {approx = true} : vector<1x1xf32> -> vector<1x1xf32>
    %33 = vector.broadcast %32 : vector<1x1xf32> to vector<1x128xf32>
    %34 = arith.mulf %29, %33 : vector<1x128xf32>
    %c0_23 = arith.constant 0 : index
    %c0_24 = arith.constant 0 : index
    %c0_25 = arith.constant 0 : index
    %35 = vector.load %arg2[%c0_23, %c0_24, %c0_25] : memref<1x16x128xf32, #tpu.memory_space<vmem>>, vector<1x16x128xf32>
    %36 = vector.shape_cast %34 : vector<1x128xf32> to vector<1x1x128xf32>
    %37 = vector.broadcast %36 : vector<1x1x128xf32> to vector<1x16x128xf32>
    %38 = arith.mulf %35, %37 : vector<1x16x128xf32>
    %cst_26 = arith.constant dense<0.000000e+00> : vector<1x16xf32>
    %39 = vector.multi_reduction <add>, %38, %cst_26 [2] : vector<1x16x128xf32> to vector<1x16xf32>
    %40 = vector.shape_cast %34 : vector<1x128xf32> to vector<1x1x128xf32>
    %c0_27 = arith.constant 0 : index
    %c0_28 = arith.constant 0 : index
    %c0_29 = arith.constant 0 : index
    %41 = vector.load %arg10[%c0_27, %c0_28, %c0_29] : memref<1x1x128xf32, #tpu.memory_space<vmem>>, vector<1x1x128xf32>
    tpu.vector_store %arg10[%c0_27, %c0_28, %c0_29], %40 {strides = array<i32>} : memref<1x1x128xf32, #tpu.memory_space<vmem>>, vector<1x1x128xf32>,
    %cst_30 = arith.constant 0.000000e+00 : f32
    %42 = vector.broadcast %cst_30 : f32 to vector<1x112xf32>
    %43 = tpu.concatenate %39, %42 in 1 : vector<1x16xf32>, vector<1x112xf32> -> vector<1x128xf32>
    %44 = vector.shape_cast %43 : vector<1x128xf32> to vector<1x1x128xf32>
    %c0_31 = arith.constant 0 : index
    %c0_32 = arith.constant 0 : index
    %c0_33 = arith.constant 0 : index
    %45 = vector.load %arg9[%c0_31, %c0_32, %c0_33] : memref<1x1x128xf32, #tpu.memory_space<vmem>>, vector<1x1x128xf32>
    tpu.vector_store %arg9[%c0_31, %c0_32, %c0_33], %44 {strides = array<i32>} : memref<1x1x128xf32, #tpu.memory_space<vmem>>, vector<1x1x128xf32>,
    return
  }
  func.func @transform_0(%arg0: i32) -> (i32, i32, i32) {
    %c0_i32 = arith.constant 0 : i32
    %c0_i32_0 = arith.constant 0 : i32
    %c0_i32_1 = arith.constant 0 : i32
    return %arg0, %c0_i32, %c0_i32_0 : i32, i32, i32
  }
  func.func @transform_1(%arg0: i32) -> (i32, i32, i32) {
    %c0_i32 = arith.constant 0 : i32
    %c0_i32_0 = arith.constant 0 : i32
    %c0_i32_1 = arith.constant 0 : i32
    return %arg0, %c0_i32, %c0_i32_0 : i32, i32, i32
  }
  func.func @transform_2(%arg0: i32) -> (i32, i32, i32) {
    %c0_i32 = arith.constant 0 : i32
    %c0_i32_0 = arith.constant 0 : i32
    %c0_i32_1 = arith.constant 0 : i32
    return %arg0, %c0_i32, %c0_i32_0 : i32, i32, i32
  }
  func.func @transform_3(%arg0: i32) -> (i32, i32, i32) {
    %c0_i32 = arith.constant 0 : i32
    %c0_i32_0 = arith.constant 0 : i32
    %c0_i32_1 = arith.constant 0 : i32
    return %arg0, %c0_i32, %c0_i32_0 : i32, i32, i32
  }
  func.func @transform_4(%arg0: i32) -> (i32, i32, i32) {
    %c0_i32 = arith.constant 0 : i32
    %c0_i32_0 = arith.constant 0 : i32
    %c0_i32_1 = arith.constant 0 : i32
    return %arg0, %c0_i32, %c0_i32_0 : i32, i32, i32
  }
  func.func @transform_5(%arg0: i32) -> (i32, i32) {
    %c0_i32 = arith.constant 0 : i32
    %c0_i32_0 = arith.constant 0 : i32
    %c0_i32_1 = arith.constant 0 : i32
    return %c0_i32, %c0_i32_0 : i32, i32
  }
  func.func @transform_6(%arg0: i32) -> (i32, i32) {
    %c0_i32 = arith.constant 0 : i32
    %c0_i32_0 = arith.constant 0 : i32
    %c0_i32_1 = arith.constant 0 : i32
    return %c0_i32, %c0_i32_0 : i32, i32
  }
  func.func @transform_7(%arg0: i32) -> (i32, i32) {
    %c0_i32 = arith.constant 0 : i32
    %c0_i32_0 = arith.constant 0 : i32
    %c0_i32_1 = arith.constant 0 : i32
    return %c0_i32, %c0_i32_0 : i32, i32
  }
  func.func @transform_8(%arg0: i32) -> (i32, i32, i32) {
    %c0_i32 = arith.constant 0 : i32
    %c0_i32_0 = arith.constant 0 : i32
    %c0_i32_1 = arith.constant 0 : i32
    return %arg0, %c0_i32, %c0_i32_0 : i32, i32, i32
  }
  func.func @transform_9(%arg0: i32) -> (i32, i32, i32) {
    %c0_i32 = arith.constant 0 : i32
    %c0_i32_0 = arith.constant 0 : i32
    %c0_i32_1 = arith.constant 0 : i32
    return %arg0, %c0_i32, %c0_i32_0 : i32, i32, i32
  }
}

</mosaic_0001>

<llo_original>
// kernel: tpu_custom_call.1
$region0: #{tpu_custom_call.1}
  #allocation0 [shape = 'u32[]', space=smem, size = 0x4, offset = 0x4, fixed_abs, tag = 'smem constant byte address 0x4 - core index']
  #allocation1 [shape = 'u32[144,128]{1,0:T(1,128)}', space=vmem, size = 0x12000, scoped, tag = 'internal scratch']
  %s0 = inlined_call_operand.vmem [shape: f32[2,1,16], index: 0, kind: input, shape index: {}]
  %s1 = inlined_call_operand.vmem [shape: f32[2,16,128], index: 1, kind: input, shape index: {}]
  %s2 = inlined_call_operand.vmem [shape: f32[2,32,128], index: 2, kind: input, shape index: {}]
  %s3 = inlined_call_operand.vmem [shape: f32[2,62,128], index: 3, kind: input, shape index: {}]
  %s4 = inlined_call_operand.vmem [shape: f32[2,1,128], index: 4, kind: input, shape index: {}]
  %s5 = inlined_call_operand.vmem [shape: f32[16,32], index: 5, kind: input, shape index: {}]
  %s6 = inlined_call_operand.vmem [shape: f32[32,62], index: 6, kind: input, shape index: {}]
  %s7 = inlined_call_operand.vmem [shape: f32[32,1], index: 7, kind: input, shape index: {}]
  %s8 = inlined_call_operand.hbm [shape: f32[2,1,128], index: 8, kind: output, shape index: {0}]
  %s9 = inlined_call_operand.hbm [shape: f32[2,1,128], index: 9, kind: output, shape index: {1}]
  %10 = xla_tuple %s8, %s9
  %s11 = sld [smem:[#allocation0]]
  $region73: #{tpu_custom_call.1} parent=0
    _
  %s13 = ssub.s32 1, %s11
  %s14 = scalar_select 0, %s13, %s11
  $region1: #{tpu_custom_call.1} parent=0
    #allocation2 [shape = 'u8[1024]{0}', space=vmem, size = 0x400, scoped, tag = 'output window, operand 0']
    #allocation3 [shape = 's32[2]{0}', space=sflag, size = 0x8, scoped, tag = 'scoped memory for tpu_custom_call.1']
    #allocation4 [shape = 'u8[1024]{0}', space=vmem, size = 0x400, scoped, tag = 'output window, operand 1']
    #allocation5 [shape = 's32[2]{0}', space=sflag, size = 0x8, scoped, tag = 'scoped memory for tpu_custom_call.1']
    %15 = vsyncpa [#allocation3], 0
    %s16 = scalar_lea.sflag [#allocation3], 1
    %17 = vsyncpa %s16, 0
    %18 = vsyncpa [#allocation5], 0
    %s19 = scalar_lea.sflag [#allocation5], 1
    %20 = vsyncpa %s19, 0
    loop: start=0, step=1, limit=4
    $region2: #{tpu_custom_call.1} parent=1 // loop_pre_header
      _
    $region3: #{tpu_custom_call.1} parent=1 // loop_header
      %s22 = sphi 0, %s26
      %p23 = scmp.ge.s32.totalorder %s22, 4
      %s32 = sphi 0, %s34
      %s35 = sphi 0, %s32
      %s36 = sphi 0, %s35
      %s52 = sphi 0, %s36
      %s58 = sphi 0, %s60
      %s61 = sphi 0, %s58
      %s62 = sphi 0, %s61
      %s78 = sphi 0, %s62
      %s84 = sphi 0, %s86
      %s87 = sphi 0, %s84
      %s88 = sphi 0, %s87
      %s104 = sphi 0, %s88
      %s110 = sphi 0, %s112
      %s113 = sphi 0, %s110
      %s114 = sphi 0, %s113
      %s130 = sphi 0, %s114
      %s136 = sphi 0, %s138
      %s139 = sphi 0, %s136
      %s140 = sphi 0, %s139
      %s156 = sphi 0, %s140
      %s160 = sphi 0, %s160
      %s162 = sphi 0, %s160
      %s163 = sphi 0, %s162
      %s177 = sphi 0, %s163
      %s181 = sphi 0, %s181
      %s183 = sphi 0, %s181
      %s184 = sphi 0, %s183
      %s198 = sphi 0, %s184
      %s202 = sphi 0, %s202
      %s204 = sphi 0, %s202
      %s205 = sphi 0, %s204
      %s219 = sphi 0, %s205
      %s225 = sphi 0, %s227
      %s228 = sphi 0, %s225
      %s229 = sphi 0, %s228
      %s245 = sphi 0, %s229
      %s251 = sphi 0, %s253
      %s254 = sphi 0, %s251
      %s255 = sphi 0, %s254
      %s271 = sphi 0, %s255
    $region4: #{tpu_custom_call.1} parent=1 // loop_header_branch
      %25 = sbr.rel (%p23) target = $region8
    $region5: #{tpu_custom_call.1} parent=1 // loop_body
      %s27 = ssub.s32 %s22, 1
      %s28 = ssub.s32 %s22, 2
      %s29 = sadd.s32 %s22, 1
      %s30 = ssub.s32 %s22, %s29
      %p31 = scmp.eq.s32.totalorder %s30, 0
      %s33 = sadd.s32 %s32, 1
      %s34 = scalar_select %p31, %s32, %s33
      %p37 = pneg %p31
      %p38 = scmp.eq.s32.totalorder %s22, 1
      %p39 = por %p37, %p38
      %p40 = scmp.ne.s32.totalorder %s32, %s35
      %p41 = scmp.eq.s32.totalorder %s22, 0
      %p42 = por %p40, %p41
      %p43 = scmp.ne.s32.totalorder %s32, %s35
      %p44 = scmp.eq.s32.totalorder %s27, 1
      %p45 = por %p43, %p44
      %p46 = scmp.ne.s32.totalorder %s35, %s36
      %p47 = scmp.eq.s32.totalorder %s27, 0
      %p48 = por %p46, %p47
      %p49 = scmp.ne.s32.totalorder %s35, %s36
      %p50 = scmp.eq.s32.totalorder %s28, 1
      %p51 = por %p49, %p50
      %p53 = scmp.ne.s32.totalorder %s36, %s52
      %p54 = scmp.eq.s32.totalorder %s28, 0
      %p55 = por %p53, %p54
      %s56 = ssub.s32 %s22, %s29
      %p57 = scmp.eq.s32.totalorder %s56, 0
      %s59 = sadd.s32 %s58, 1
      %s60 = scalar_select %p57, %s58, %s59
      %p63 = pneg %p57
      %p64 = scmp.eq.s32.totalorder %s22, 1
      %p65 = por %p63, %p64
      %p66 = scmp.ne.s32.totalorder %s58, %s61
      %p67 = scmp.eq.s32.totalorder %s22, 0
      %p68 = por %p66, %p67
      %p69 = scmp.ne.s32.totalorder %s58, %s61
      %p70 = scmp.eq.s32.totalorder %s27, 1
      %p71 = por %p69, %p70
      %p72 = scmp.ne.s32.totalorder %s61, %s62
      %p73 = scmp.eq.s32.totalorder %s27, 0
      %p74 = por %p72, %p73
      %p75 = scmp.ne.s32.totalorder %s61, %s62
      %p76 = scmp.eq.s32.totalorder %s28, 1
      %p77 = por %p75, %p76
      %p79 = scmp.ne.s32.totalorder %s62, %s78
      %p80 = scmp.eq.s32.totalorder %s28, 0
      %p81 = por %p79, %p80
      %s82 = ssub.s32 %s22, %s29
      %p83 = scmp.eq.s32.totalorder %s82, 0
      %s85 = sadd.s32 %s84, 1
      %s86 = scalar_select %p83, %s84, %s85
      %p89 = pneg %p83
      %p90 = scmp.eq.s32.totalorder %s22, 1
      %p91 = por %p89, %p90
      %p92 = scmp.ne.s32.totalorder %s84, %s87
      %p93 = scmp.eq.s32.totalorder %s22, 0
      %p94 = por %p92, %p93
      %p95 = scmp.ne.s32.totalorder %s84, %s87
      %p96 = scmp.eq.s32.totalorder %s27, 1
      %p97 = por %p95, %p96
      %p98 = scmp.ne.s32.totalorder %s87, %s88
      %p99 = scmp.eq.s32.totalorder %s27, 0
      %p100 = por %p98, %p99
      %p101 = scmp.ne.s32.totalorder %s87, %s88
      %p102 = scmp.eq.s32.totalorder %s28, 1
      %p103 = por %p101, %p102
      %p105 = scmp.ne.s32.totalorder %s88, %s104
      %p106 = scmp.eq.s32.totalorder %s28, 0
      %p107 = por %p105, %p106
      %s108 = ssub.s32 %s22, %s29
      %p109 = scmp.eq.s32.totalorder %s108, 0
      %s111 = sadd.s32 %s110, 1
      %s112 = scalar_select %p109, %s110, %s111
      %p115 = pneg %p109
      %p116 = scmp.eq.s32.totalorder %s22, 1
      %p117 = por %p115, %p116
      %p118 = scmp.ne.s32.totalorder %s110, %s113
      %p119 = scmp.eq.s32.totalorder %s22, 0
      %p120 = por %p118, %p119
      %p121 = scmp.ne.s32.totalorder %s110, %s113
      %p122 = scmp.eq.s32.totalorder %s27, 1
      %p123 = por %p121, %p122
      %p124 = scmp.ne.s32.totalorder %s113, %s114
      %p125 = scmp.eq.s32.totalorder %s27, 0
      %p126 = por %p124, %p125
      %p127 = scmp.ne.s32.totalorder %s113, %s114
      %p128 = scmp.eq.s32.totalorder %s28, 1
      %p129 = por %p127, %p128
      %p131 = scmp.ne.s32.totalorder %s114, %s130
      %p132 = scmp.eq.s32.totalorder %s28, 0
      %p133 = por %p131, %p132
      %s134 = ssub.s32 %s22, %s29
      %p135 = scmp.eq.s32.totalorder %s134, 0
      %s137 = sadd.s32 %s136, 1
      %s138 = scalar_select %p135, %s136, %s137
      %p141 = pneg %p135
      %p142 = scmp.eq.s32.totalorder %s22, 1
      %p143 = por %p141, %p142
      %p144 = scmp.ne.s32.totalorder %s136, %s139
      %p145 = scmp.eq.s32.totalorder %s22, 0
      %p146 = por %p144, %p145
      %p147 = scmp.ne.s32.totalorder %s136, %s139
      %p148 = scmp.eq.s32.totalorder %s27, 1
      %p149 = por %p147, %p148
      %p150 = scmp.ne.s32.totalorder %s139, %s140
      %p151 = scmp.eq.s32.totalorder %s27, 0
      %p152 = por %p150, %p151
      %p153 = scmp.ne.s32.totalorder %s139, %s140
      %p154 = scmp.eq.s32.totalorder %s28, 1
      %p155 = por %p153, %p154
      %p157 = scmp.ne.s32.totalorder %s140, %s156
      %p158 = scmp.eq.s32.totalorder %s28, 0
      %p159 = por %p157, %p158
      %s161 = sadd.s32 %s160, 1
      %p164 = scmp.eq.s32.totalorder %s22, 1
      %p165 = scmp.ne.s32.totalorder %s160, %s162
      %p166 = scmp.eq.s32.totalorder %s22, 0
      %p167 = por %p165, %p166
      %p168 = scmp.ne.s32.totalorder %s160, %s162
      %p169 = scmp.eq.s32.totalorder %s27, 1
      %p170 = por %p168, %p169
      %p171 = scmp.ne.s32.totalorder %s162, %s163
      %p172 = scmp.eq.s32.totalorder %s27, 0
      %p173 = por %p171, %p172
      %p174 = scmp.ne.s32.totalorder %s162, %s163
      %p175 = scmp.eq.s32.totalorder %s28, 1
      %p176 = por %p174, %p175
      %p178 = scmp.ne.s32.totalorder %s163, %s177
      %p179 = scmp.eq.s32.totalorder %s28, 0
      %p180 = por %p178, %p179
      %s182 = sadd.s32 %s181, 1
      %p185 = scmp.eq.s32.totalorder %s22, 1
      %p186 = scmp.ne.s32.totalorder %s181, %s183
      %p187 = scmp.eq.s32.totalorder %s22, 0
      %p188 = por %p186, %p187
      %p189 = scmp.ne.s32.totalorder %s181, %s183
      %p190 = scmp.eq.s32.totalorder %s27, 1
      %p191 = por %p189, %p190
      %p192 = scmp.ne.s32.totalorder %s183, %s184
      %p193 = scmp.eq.s32.totalorder %s27, 0
      %p194 = por %p192, %p193
      %p195 = scmp.ne.s32.totalorder %s183, %s184
      %p196 = scmp.eq.s32.totalorder %s28, 1
      %p197 = por %p195, %p196
      %p199 = scmp.ne.s32.totalorder %s184, %s198
      %p200 = scmp.eq.s32.totalorder %s28, 0
      %p201 = por %p199, %p200
      %s203 = sadd.s32 %s202, 1
      %p206 = scmp.eq.s32.totalorder %s22, 1
      %p207 = scmp.ne.s32.totalorder %s202, %s204
      %p208 = scmp.eq.s32.totalorder %s22, 0
      %p209 = por %p207, %p208
      %p210 = scmp.ne.s32.totalorder %s202, %s204
      %p211 = scmp.eq.s32.totalorder %s27, 1
      %p212 = por %p210, %p211
      %p213 = scmp.ne.s32.totalorder %s204, %s205
      %p214 = scmp.eq.s32.totalorder %s27, 0
      %p215 = por %p213, %p214
      %p216 = scmp.ne.s32.totalorder %s204, %s205
      %p217 = scmp.eq.s32.totalorder %s28, 1
      %p218 = por %p216, %p217
      %p220 = scmp.ne.s32.totalorder %s205, %s219
      %p221 = scmp.eq.s32.totalorder %s28, 0
      %p222 = por %p220, %p221
      %s223 = ssub.s32 %s22, %s29
      %p224 = scmp.eq.s32.totalorder %s223, 0
      %s226 = sadd.s32 %s225, 1
      %s227 = scalar_select %p224, %s225, %s226
      %p230 = pneg %p224
      %p231 = scmp.eq.s32.totalorder %s22, 1
      %p232 = por %p230, %p231
      %p233 = scmp.ne.s32.totalorder %s225, %s228
      %p234 = scmp.eq.s32.totalorder %s22, 0
      %p235 = por %p233, %p234
      %p236 = scmp.ne.s32.totalorder %s225, %s228
      %p237 = scmp.eq.s32.totalorder %s27, 1
      %p238 = por %p236, %p237
      %p239 = scmp.ne.s32.totalorder %s228, %s229
      %p240 = scmp.eq.s32.totalorder %s27, 0
      %p241 = por %p239, %p240
      %p242 = scmp.ne.s32.totalorder %s228, %s229
      %p243 = scmp.eq.s32.totalorder %s28, 1
      %p244 = por %p242, %p243
      %p246 = scmp.ne.s32.totalorder %s229, %s245
      %p247 = scmp.eq.s32.totalorder %s28, 0
      %p248 = por %p246, %p247
      %s249 = ssub.s32 %s22, %s29
      %p250 = scmp.eq.s32.totalorder %s249, 0
      %s252 = sadd.s32 %s251, 1
      %s253 = scalar_select %p250, %s251, %s252
      %p256 = pneg %p250
      %p257 = scmp.eq.s32.totalorder %s22, 1
      %p258 = por %p256, %p257
      %p259 = scmp.ne.s32.totalorder %s251, %s254
      %p260 = scmp.eq.s32.totalorder %s22, 0
      %p261 = por %p259, %p260
      %p262 = scmp.ne.s32.totalorder %s251, %s254
      %p263 = scmp.eq.s32.totalorder %s27, 1
      %p264 = por %p262, %p263
      %p265 = scmp.ne.s32.totalorder %s254, %s255
      %p266 = scmp.eq.s32.totalorder %s27, 0
      %p267 = por %p265, %p266
      %p268 = scmp.ne.s32.totalorder %s254, %s255
      %p269 = scmp.eq.s32.totalorder %s28, 1
      %p270 = por %p268, %p269
      %p272 = scmp.ne.s32.totalorder %s255, %s271
      %p273 = scmp.eq.s32.totalorder %s28, 0
      %p274 = por %p272, %p273
      %p275 = scmp.le.s32.totalorder 1, %s22
      %p276 = scmp.lt.s32.totalorder %s22, 3
      %p277 = pnand %p275, %p276
      %p278 = pneg %p277
      // Predicated region
      $region9: #{tpu_custom_call.1} parent=5 // pred_check
        _
      $region10: #{tpu_custom_call.1} parent=5 // pred_check_branch
        %280 = sbr.rel (%p277) target = $region12
      $region11: #{tpu_custom_call.1} parent=5 // pred_region
        %s281 = ssub.s32 %s22, 1
        // Predicated region
        $region13: #{tpu_custom_call.1} parent=11 // pred_check
          %p282 = pneg %p173
        $region14: #{tpu_custom_call.1} parent=11 // pred_check_branch
          %284 = sbr.rel (%p282) target = $region16
        $region15: #{tpu_custom_call.1} parent=11 // pred_region
          _
        $region16: #{tpu_custom_call.1} parent=11 // pred_fallthru
          _
        // Predicated region
        $region17: #{tpu_custom_call.1} parent=11 // pred_check
          %p285 = pneg %p194
        $region18: #{tpu_custom_call.1} parent=11 // pred_check_branch
          %287 = sbr.rel (%p285) target = $region20
        $region19: #{tpu_custom_call.1} parent=11 // pred_region
          _
        $region20: #{tpu_custom_call.1} parent=11 // pred_fallthru
          _
        // Predicated region
        $region21: #{tpu_custom_call.1} parent=11 // pred_check
          %p288 = pneg %p215
        $region22: #{tpu_custom_call.1} parent=11 // pred_check_branch
          %290 = sbr.rel (%p288) target = $region24
        $region23: #{tpu_custom_call.1} parent=11 // pred_region
          _
        $region24: #{tpu_custom_call.1} parent=11 // pred_fallthru
          _
      $region12: #{tpu_custom_call.1} parent=5 // pred_fallthru
        _
      %p291 = scmp.lt.s32.totalorder %s22, 2
      // Predicated region
      $region25: #{tpu_custom_call.1} parent=5 // pred_check
        %p292 = pneg %p291
      $region26: #{tpu_custom_call.1} parent=5 // pred_check_branch
        %294 = sbr.rel (%p292) target = $region28
      $region27: #{tpu_custom_call.1} parent=5 // pred_region
        // Predicated region
        $region29: #{tpu_custom_call.1} parent=27 // pred_check
          %p295 = pneg %p42
        $region30: #{tpu_custom_call.1} parent=27 // pred_check_branch
          %297 = sbr.rel (%p295) target = $region32
        $region31: #{tpu_custom_call.1} parent=27 // pred_region
          %p298 = scmp.lt.s32.totalorder %s22, 1
          %s299 = scalar_select %p298, %s22, 1
          %s300 = scalar_lea.vmem %s0, %s299
        $region32: #{tpu_custom_call.1} parent=27 // pred_fallthru
          _
        // Predicated region
        $region33: #{tpu_custom_call.1} parent=27 // pred_check
          %p301 = pneg %p68
        $region34: #{tpu_custom_call.1} parent=27 // pred_check_branch
          %303 = sbr.rel (%p301) target = $region36
        $region35: #{tpu_custom_call.1} parent=27 // pred_region
          %p304 = scmp.lt.s32.totalorder %s22, 1
          %s305 = scalar_select %p304, %s22, 1
          %s306 = smul.addr %s305, 2
          %s307 = smul.addr %s306, 8
          %s308 = scalar_lea.vmem %s1, %s307
        $region36: #{tpu_custom_call.1} parent=27 // pred_fallthru
          _
        // Predicated region
        $region37: #{tpu_custom_call.1} parent=27 // pred_check
          %p309 = pneg %p94
        $region38: #{tpu_custom_call.1} parent=27 // pred_check_branch
          %311 = sbr.rel (%p309) target = $region40
        $region39: #{tpu_custom_call.1} parent=27 // pred_region
          %p312 = scmp.lt.s32.totalorder %s22, 1
          %s313 = scalar_select %p312, %s22, 1
          %s314 = smul.addr %s313, 4
          %s315 = smul.addr %s314, 8
          %s316 = scalar_lea.vmem %s2, %s315
        $region40: #{tpu_custom_call.1} parent=27 // pred_fallthru
          _
        // Predicated region
        $region41: #{tpu_custom_call.1} parent=27 // pred_check
          %p317 = pneg %p120
        $region42: #{tpu_custom_call.1} parent=27 // pred_check_branch
          %319 = sbr.rel (%p317) target = $region44
        $region43: #{tpu_custom_call.1} parent=27 // pred_region
          %p320 = scmp.lt.s32.totalorder %s22, 1
          %s321 = scalar_select %p320, %s22, 1
          %s322 = smul.addr %s321, 8
          %s323 = smul.addr %s322, 8
          %s324 = scalar_lea.vmem %s3, %s323
        $region44: #{tpu_custom_call.1} parent=27 // pred_fallthru
          _
        // Predicated region
        $region45: #{tpu_custom_call.1} parent=27 // pred_check
          %p325 = pneg %p146
        $region46: #{tpu_custom_call.1} parent=27 // pred_check_branch
          %327 = sbr.rel (%p325) target = $region48
        $region47: #{tpu_custom_call.1} parent=27 // pred_region
          %p328 = scmp.lt.s32.totalorder %s22, 1
          %s329 = scalar_select %p328, %s22, 1
          %s330 = scalar_lea.vmem %s4, %s329
        $region48: #{tpu_custom_call.1} parent=27 // pred_fallthru
          _
      $region28: #{tpu_custom_call.1} parent=5 // pred_fallthru
        _
      %p331 = scmp.le.s32.totalorder 1, %s22
      %p332 = scmp.lt.s32.totalorder %s22, 3
      %p333 = pnand %p331, %p332
      %p334 = pneg %p333
      // Predicated region
      $region49: #{tpu_custom_call.1} parent=5 // pred_check
        _
      $region50: #{tpu_custom_call.1} parent=5 // pred_check_branch
        %336 = sbr.rel (%p333) target = $region52
      $region51: #{tpu_custom_call.1} parent=5 // pred_region
        %s337 = ssub.s32 %s22, 1
        %p338 = scmp.lt.s32.totalorder %s27, 1
        %s339 = scalar_select %p338, %s27, 1
        %s340 = scalar_lea.vmem %s0, %s339
        %p341 = pneg %p48
        %p342 = pneg %p45
        %p343 = scmp.lt.s32.totalorder %s27, 1
        %s344 = scalar_select %p343, %s27, 1
        %s345 = smul.addr %s344, 2
        %s346 = smul.addr %s345, 8
        %s347 = scalar_lea.vmem %s1, %s346
        %p348 = pneg %p74
        %p349 = pneg %p71
        %p350 = scmp.lt.s32.totalorder %s27, 1
        %s351 = scalar_select %p350, %s27, 1
        %s352 = smul.addr %s351, 4
        %s353 = smul.addr %s352, 8
        %s354 = scalar_lea.vmem %s2, %s353
        %p355 = pneg %p100
        %p356 = pneg %p97
        %p357 = scmp.lt.s32.totalorder %s27, 1
        %s358 = scalar_select %p357, %s27, 1
        %s359 = smul.addr %s358, 8
        %s360 = smul.addr %s359, 8
        %s361 = scalar_lea.vmem %s3, %s360
        %p362 = pneg %p126
        %p363 = pneg %p123
        %p364 = scmp.lt.s32.totalorder %s27, 1
        %s365 = scalar_select %p364, %s27, 1
        %s366 = scalar_lea.vmem %s4, %s365
        %p367 = pneg %p152
        %p368 = pneg %p149
        %p369 = pneg %p173
        %p370 = pneg %p170
        %p371 = pneg %p194
        %p372 = pneg %p191
        %p373 = pneg %p215
        %p374 = pneg %p212
        %p375 = pneg %p241
        %p376 = pneg %p238
        %s377 = sand.u32 %s228, 1
        %s378 = scalar_lea.sflag [#allocation3], %s377
        %s379 = sand.u32 %s228, 1
        %s380 = scalar_lea.vmem [#allocation2], %s379
        %p381 = pneg %p267
        %p382 = pneg %p264
        %s383 = sand.u32 %s254, 1
        %s384 = scalar_lea.sflag [#allocation5], %s383
        %s385 = sand.u32 %s254, 1
        %s386 = scalar_lea.vmem [#allocation4], %s385
        %p387 = scmp.lt.s32.totalorder %s27, 1
        %s388 = scalar_select %p387, %s27, 1
        %s389 = scalar_lea.vmem %s0, %s388
        %p390 = scmp.lt.s32.totalorder %s27, 1
        %s391 = scalar_select %p390, %s27, 1
        %s392 = smul.addr %s391, 2
        %s393 = smul.addr %s392, 8
        %s394 = scalar_lea.vmem %s1, %s393
        %p395 = scmp.lt.s32.totalorder %s27, 1
        %s396 = scalar_select %p395, %s27, 1
        %s397 = smul.addr %s396, 4
        %s398 = smul.addr %s397, 8
        %s399 = scalar_lea.vmem %s2, %s398
        %p400 = scmp.lt.s32.totalorder %s27, 1
        %s401 = scalar_select %p400, %s27, 1
        %s402 = smul.addr %s401, 8
        %s403 = smul.addr %s402, 8
        %s404 = scalar_lea.vmem %s3, %s403
        %p405 = scmp.lt.s32.totalorder %s27, 1
        %s406 = scalar_select %p405, %s27, 1
        %s407 = scalar_lea.vmem %s4, %s406
        %v408 = vld [vmem:[%s389] sm:$0x1]
        %v409 = vld [vmem:[%s5] sm:$0xff]
        %v410 = vld [vmem:[%s5 + $0x8] sm:$0xff]
        %vm411 = vcmask 130048
        %v413 = vsel %vm411, %v408, 0
        %415 = vmatprep.subr.mxu0 0.0
        %416 = vmatpush1.msra.mxu0 %v409
        %417 = vmatprep.subr.mxu0 0.0
        %418 = vmatpush1.msra.mxu0 %v410
        %419 = vmatprep.subr.mxu0 0.0
        %420 = vmatpush1.msra.mxu0 0.0
        %421 = vmatprep.subr.mxu0 0.0
        %422 = vmatpush1.msra.mxu0 0.0
        %423 = vmatprep.subr.mxu0 0.0
        %424 = vmatpush1.msra.mxu0 0.0
        %425 = vmatprep.subr.mxu0 0.0
        %426 = vmatpush1.msra.mxu0 0.0
        %427 = vmatprep.subr.mxu0 0.0
        %428 = vmatpush1.msra.mxu0 0.0
        %429 = vmatprep.subr.mxu0 0.0
        %430 = vmatpush1.msra.mxu0 0.0
        %431 = vmatprep.subr.mxu0 0.0
        %432 = vmatpush1.msra.mxu0 0.0
        %433 = vmatprep.subr.mxu0 0.0
        %434 = vmatpush1.msra.mxu0 0.0
        %435 = vmatprep.subr.mxu0 0.0
        %436 = vmatpush1.msra.mxu0 0.0
        %437 = vmatprep.subr.mxu0 0.0
        %438 = vmatpush1.msra.mxu0 0.0
        %439 = vmatprep.subr.mxu0 0.0
        %440 = vmatpush1.msra.mxu0 0.0
        %441 = vmatprep.subr.mxu0 0.0
        %442 = vmatpush1.msra.mxu0 0.0
        %443 = vmatprep.subr.mxu0 0.0
        %444 = vmatpush1.msra.mxu0 0.0
        %445 = vmatprep.subr.mxu0 0.0
        %446 = vmatpush1.msra.mxu0 0.0
        %447 = vmatprep.subr.mxu0 0.0
        %448 = vmatpush1.msra.mxu0 0.0
        %449 = vmatprep.subr.mxu0 0.0
        %450 = vmatpush1.msra.mxu0 0.0
        %451 = vmatprep.subr.mxu0 0.0
        %452 = vmatpush1.msra.mxu0 0.0
        %453 = vmatprep.subr.mxu0 0.0
        %454 = vmatpush1.msra.mxu0 0.0
        %455 = vmatprep.subr.mxu0 0.0
        %456 = vmatpush1.msra.mxu0 0.0
        %457 = vmatprep.subr.mxu0 0.0
        %458 = vmatpush1.msra.mxu0 0.0
        %459 = vmatprep.subr.mxu0 0.0
        %460 = vmatpush1.msra.mxu0 0.0
        %461 = vmatprep.subr.mxu0 0.0
        %462 = vmatpush1.msra.mxu0 0.0
        %463 = vmatprep.subr.mxu0 0.0
        %464 = vmatpush1.msra.mxu0 0.0
        %465 = vmatprep.subr.mxu0 0.0
        %466 = vmatpush1.msra.mxu0 0.0
        %467 = vmatprep.subr.mxu0 0.0
        %468 = vmatpush1.msra.mxu0 0.0
        %469 = vmatprep.subr.mxu0 0.0
        %470 = vmatpush1.msra.mxu0 0.0
        %471 = vmatprep.subr.mxu0 0.0
        %472 = vmatpush1.msra.mxu0 0.0
        %473 = vmatprep.subr.mxu0 0.0
        %474 = vmatpush1.msra.mxu0 0.0
        %475 = vmatprep.subr.mxu0 0.0
        %476 = vmatpush1.msra.mxu0 0.0
        %477 = vmatprep.subr.mxu0 0.0
        %478 = vmatpush1.msra.mxu0 0.0
        %479 = vmatprep.mubr.f32.mxu0 0.0
        %480 = vmatmul.mubr.f32.gmra.mrb[0].mxu0 %v413
        %v481 = vpop.f32.mrb[0].mxu0
        %v482 = vadd.f32 0.0, %v481
        %v483 = vpop.f32.mrb[0].mxu0
        %484 = vdwg.mxu0
        %v485 = vld [vmem:[%s404] sm:$0xff]
        %v486 = vld [vmem:[%s404 + $0x8] sm:$0xff]
        %v487 = vld [vmem:[%s404 + $0x10] sm:$0xff]
        %v488 = vld [vmem:[%s404 + $0x18] sm:$0xff]
        %v489 = vld [vmem:[%s404 + $0x20] sm:$0xff]
        %v490 = vld [vmem:[%s404 + $0x28] sm:$0xff]
        %v491 = vld [vmem:[%s404 + $0x30] sm:$0xff]
        %v492 = vld [vmem:[%s404 + $0x38] sm:$0x3f]
        %v493 = vld [vmem:[%s6] sm:$0xff]
        %v494 = vld [vmem:[%s6 + $0x8] sm:$0xff]
        %v495 = vld [vmem:[%s6 + $0x10] sm:$0xff]
        %v496 = vld [vmem:[%s6 + $0x18] sm:$0xff]
        %vm497 = vcmask 506880
        %v499 = vsel %vm497, %v493, 0
        %v502 = vsel %vm497, %v494, 0
        %v505 = vsel %vm497, %v495, 0
        %v508 = vsel %vm497, %v496, 0
        %vm510 = vcmask 1045504
        %v512 = vsel %vm510, %v492, 0
        %514 = vmatprep.subr.mxu0 0.0
        %515 = vmatpush1.msra.mxu0 %v485
        %516 = vmatprep.subr.mxu0 0.0
        %517 = vmatpush1.msra.mxu0 %v486
        %518 = vmatprep.subr.mxu0 0.0
        %519 = vmatpush1.msra.mxu0 %v487
        %520 = vmatprep.subr.mxu0 0.0
        %521 = vmatpush1.msra.mxu0 %v488
        %522 = vmatprep.subr.mxu0 0.0
        %523 = vmatpush1.msra.mxu0 %v489
        %524 = vmatprep.subr.mxu0 0.0
        %525 = vmatpush1.msra.mxu0 %v490
        %526 = vmatprep.subr.mxu0 0.0
        %527 = vmatpush1.msra.mxu0 %v491
        %528 = vmatprep.subr.mxu0 0.0
        %529 = vmatpush1.msra.mxu0 %v512
        %530 = vmatprep.subr.mxu0 0.0
        %531 = vmatpush1.msra.mxu0 0.0
        %532 = vmatprep.subr.mxu0 0.0
        %533 = vmatpush1.msra.mxu0 0.0
        %534 = vmatprep.subr.mxu0 0.0
        %535 = vmatpush1.msra.mxu0 0.0
        %536 = vmatprep.subr.mxu0 0.0
        %537 = vmatpush1.msra.mxu0 0.0
        %538 = vmatprep.subr.mxu0 0.0
        %539 = vmatpush1.msra.mxu0 0.0
        %540 = vmatprep.subr.mxu0 0.0
        %541 = vmatpush1.msra.mxu0 0.0
        %542 = vmatprep.subr.mxu0 0.0
        %543 = vmatpush1.msra.mxu0 0.0
        %544 = vmatprep.subr.mxu0 0.0
        %545 = vmatpush1.msra.mxu0 0.0
        %546 = vmatprep.subr.mxu0 0.0
        %547 = vmatpush1.msra.mxu0 0.0
        %548 = vmatprep.subr.mxu0 0.0
        %549 = vmatpush1.msra.mxu0 0.0
        %550 = vmatprep.subr.mxu0 0.0
        %551 = vmatpush1.msra.mxu0 0.0
        %552 = vmatprep.subr.mxu0 0.0
        %553 = vmatpush1.msra.mxu0 0.0
        %554 = vmatprep.subr.mxu0 0.0
        %555 = vmatpush1.msra.mxu0 0.0
        %556 = vmatprep.subr.mxu0 0.0
        %557 = vmatpush1.msra.mxu0 0.0
        %558 = vmatprep.subr.mxu0 0.0
        %559 = vmatpush1.msra.mxu0 0.0
        %560 = vmatprep.subr.mxu0 0.0
        %561 = vmatpush1.msra.mxu0 0.0
        %562 = vmatprep.subr.mxu0 0.0
        %563 = vmatpush1.msra.mxu0 0.0
        %564 = vmatprep.subr.mxu0 0.0
        %565 = vmatpush1.msra.mxu0 0.0
        %566 = vmatprep.subr.mxu0 0.0
        %567 = vmatpush1.msra.mxu0 0.0
        %568 = vmatprep.subr.mxu0 0.0
        %569 = vmatpush1.msra.mxu0 0.0
        %570 = vmatprep.subr.mxu0 0.0
        %571 = vmatpush1.msra.mxu0 0.0
        %572 = vmatprep.subr.mxu0 0.0
        %573 = vmatpush1.msra.mxu0 0.0
        %574 = vmatprep.subr.mxu0 0.0
        %575 = vmatpush1.msra.mxu0 0.0
        %576 = vmatprep.subr.mxu0 0.0
        %577 = vmatpush1.msra.mxu0 0.0
        %578 = vmatprep.mubr.f32.mxu0 0.0
        %579 = vmatmul.mubr.f32.gmra.mrb[0].mxu0 %v499
        %v580 = vpop.f32.mrb[0].mxu0
        %v581 = vadd.f32 0.0, %v580
        %v582 = vpop.f32.mrb[0].mxu0
        %583 = vmatprep.mubr.f32.mxu0 0.0
        %584 = vmatmul.mubr.f32.gmra.mrb[0].mxu0 %v502
        %v585 = vpop.f32.mrb[0].mxu0
        %v586 = vadd.f32 0.0, %v585
        %v587 = vpop.f32.mrb[0].mxu0
        %588 = vmatprep.mubr.f32.mxu0 0.0
        %589 = vmatmul.mubr.f32.gmra.mrb[0].mxu0 %v505
        %v590 = vpop.f32.mrb[0].mxu0
        %v591 = vadd.f32 0.0, %v590
        %v592 = vpop.f32.mrb[0].mxu0
        %593 = vmatprep.mubr.f32.mxu0 0.0
        %594 = vmatmul.mubr.f32.gmra.mrb[0].mxu0 %v508
        %v595 = vpop.f32.mrb[0].mxu0
        %v596 = vadd.f32 0.0, %v595
        %v597 = vpop.f32.mrb[0].mxu0
        %598 = vdwg.mxu0
        %v599 = vlaneseq
        %v600 = vshrl.u32 %v599, 7
        %v601 = vsub.s32 0, %v600
        %v602 = vrot.slane %v482, %v601
        %604 = vbcast.lane.b32.xlu0 %v602, 256
        %v605 = vpop.permute.xlu0 %604
        %s607 = sor.u32 256, 8
        %608 = vbcast.lane.b32.xlu0 %v602, %s607
        %v609 = vpop.permute.xlu0 %608
        %s611 = sor.u32 256, 16
        %612 = vbcast.lane.b32.xlu0 %v602, %s611
        %v613 = vpop.permute.xlu0 %612
        %s615 = sor.u32 256, 24
        %616 = vbcast.lane.b32.xlu0 %v602, %s615
        %v617 = vpop.permute.xlu0 %616
        %v618 = vadd.f32 %v605, %v581
        %v619 = vadd.f32 %v609, %v586
        %v620 = vadd.f32 %v613, %v591
        %v621 = vadd.f32 %v617, %v596
        %v622 = vld [vmem:[%s399] sm:$0xff]
        %v623 = vld [vmem:[%s399 + $0x8] sm:$0xff]
        %v624 = vld [vmem:[%s399 + $0x10] sm:$0xff]
        %v625 = vld [vmem:[%s399 + $0x18] sm:$0xff]
        %v626 = vadd.f32 %v618, %v622
        %v627 = vadd.f32 %v619, %v623
        %v628 = vadd.f32 %v620, %v624
        %v629 = vadd.f32 %v621, %v625
        %v630 = vtanh.pop %v626
        %v631 = vtanh.pop %v627
        %v632 = vtanh.pop %v628
        %v633 = vtanh.pop %v629
        %v634 = vld [vmem:[%s7] sm:$0xff]
        %v635 = vld [vmem:[%s7 + $0x8] sm:$0xff]
        %v636 = vld [vmem:[%s7 + $0x10] sm:$0xff]
        %v637 = vld [vmem:[%s7 + $0x18] sm:$0xff]
        %639 = vset.pattern.permute.xlu0 0
        %640 = vperm.xlu0 %639, %v634
        %v641 = vpop.permute.xlu0 %640
        %644 = vset.pattern.permute.xlu0 0
        %645 = vperm.xlu0 %644, %v635
        %v646 = vpop.permute.xlu0 %645
        %649 = vset.pattern.permute.xlu0 0
        %650 = vperm.xlu0 %649, %v636
        %v651 = vpop.permute.xlu0 %650
        %654 = vset.pattern.permute.xlu0 0
        %655 = vperm.xlu0 %654, %v637
        %v656 = vpop.permute.xlu0 %655
        %v658 = vmul.f32 %v641, %v630
        %v659 = vmul.f32 %v646, %v631
        %v660 = vmul.f32 %v651, %v632
        %v661 = vmul.f32 %v656, %v633
        %v662 = vadd.f32 %v658, %v659
        %v663 = vadd.f32 %v662, %v660
        %v664 = vadd.f32 %v663, %v661
        %v665 = vrot.slane %v664, 4
        %v666 = vadd.f32 %v664, %v665
        %v667 = vrot.slane %v666, 2
        %v668 = vadd.f32 %v666, %v667
        %v669 = vrot.slane %v668, 1
        %v670 = vadd.f32 %v668, %v669
        %v671 = vld [vmem:[%s407] sm:$0x1]
        %vm672 = vcmp.gt.f32.partialorder %v671, 0.5
        %v673 = vsel %vm672, -3.4028235e+38, %v670
        %vm674 = vcmask 1040384
        %v675 = vsel %vm674, %v673, -inf
        %676 = vmax.xlane.f32.xlu0 %v675
        %v677 = vpop.xlane.xlu0 %676
        %v678 = vsub.f32 %v673, %v677
        %v679 = vmul.f32 %v678, 1.442695
        %v680 = vpow.pop %v679
        %v681 = vsel %vm674, %v680, 0.0
        %682 = vadd.xlane.f32.xlu0 %v681
        %v683 = vpop.xlane.xlu0 %682
        %v684 = vrcp.pop %v683
        %v685 = vmul.f32 %v680, %v684
        %v686 = vld [vmem:[%s394] sm:$0xff]
        %v687 = vld [vmem:[%s394 + $0x8] sm:$0xff]
        %v689 = vlaneseq
        %v690 = vshrl.u32 %v689, 7
        %v691 = vsub.s32 0, %v690
        %v692 = vrot.slane %v685, %v691
        %v694 = vmul.f32 %v686, %v692
        %v695 = vmul.f32 %v687, %v692
        %696 = vadd.xlane.f32.xlu0 %v694
        %v697 = vpop.xlane.xlu0 %696
        %698 = vadd.xlane.f32.xlu0 %v695
        %v699 = vpop.xlane.xlu0 %698
        %700 = vst [vmem:[%s386] sm:$0x1] %v685
        %v703 = vlaneseq
        %v704 = vand.u32 %v703, 127
        %v705 = vlaneseq
        %v706 = vshrl.u32 %v705, 7
        %v707 = vsub.s32 %v704, %v706
        %v708 = vrot.slane %v697, %v707
        %v709 = vadd.s32 %v704, 4294967288
        %v710 = vlaneseq
        %v711 = vshrl.u32 %v710, 7
        %v712 = vsub.s32 %v709, %v711
        %v713 = vrot.slane %v699, %v712
        %vm714 = vcmask 130112
        %v715 = vsel %vm714, %v713, %v708
        %v717 = vsel %vm411, %v715, 0.0
        %718 = vst [vmem:[%s380] sm:$0x1] %v717
        %s719 = sand.u32 %s228, 1
        %s720 = scalar_lea.sflag [#allocation3], %s719
        %s721 = sand.u32 %s228, 1
        %s722 = scalar_lea.vmem [#allocation2], %s721
        %s723 = sand.u32 %s254, 1
        %s724 = scalar_lea.sflag [#allocation5], %s723
        %s725 = sand.u32 %s254, 1
        %s726 = scalar_lea.vmem [#allocation4], %s725
        // Predicated region
        $region53: #{tpu_custom_call.1} parent=51 // pred_check
          %p727 = pneg %p238
        $region54: #{tpu_custom_call.1} parent=51 // pred_check_branch
          %729 = sbr.rel (%p727) target = $region56
        $region55: #{tpu_custom_call.1} parent=51 // pred_region
          %s731 = ssub.s32 16, 16
          %732 = vsyncadd %s720, %s731
          %s733 = smul.addr %s27, 16
          %s734 = scalar_lea.hbm %s8, %s733
          %s736 = sshll.u32 %s722, 4
          %s737 = int_to_ptr.vmem [resolvable:$true] %s736
          %739 = dma.vmem_to_hbm [thread:$0]  %s737, 16, %s734, %s720
        $region56: #{tpu_custom_call.1} parent=51 // pred_fallthru
          _
        // Predicated region
        $region57: #{tpu_custom_call.1} parent=51 // pred_check
          %p740 = pneg %p264
        $region58: #{tpu_custom_call.1} parent=51 // pred_check_branch
          %742 = sbr.rel (%p740) target = $region60
        $region59: #{tpu_custom_call.1} parent=51 // pred_region
          %s744 = ssub.s32 16, 16
          %745 = vsyncadd %s724, %s744
          %s746 = smul.addr %s27, 16
          %s747 = scalar_lea.hbm %s9, %s746
          %s749 = sshll.u32 %s726, 4
          %s750 = int_to_ptr.vmem [resolvable:$true] %s749
          %752 = dma.vmem_to_hbm [thread:$0]  %s750, 16, %s747, %s724
        $region60: #{tpu_custom_call.1} parent=51 // pred_fallthru
          _
      $region52: #{tpu_custom_call.1} parent=5 // pred_fallthru
        _
      %p753 = scmp.le.s32.totalorder 2, %s22
      // Predicated region
      $region61: #{tpu_custom_call.1} parent=5 // pred_check
        %p754 = pneg %p753
      $region62: #{tpu_custom_call.1} parent=5 // pred_check_branch
        %756 = sbr.rel (%p754) target = $region64
      $region63: #{tpu_custom_call.1} parent=5 // pred_region
        %s757 = ssub.s32 %s22, 2
        // Predicated region
        $region65: #{tpu_custom_call.1} parent=63 // pred_check
          %p758 = pneg %p244
        $region66: #{tpu_custom_call.1} parent=63 // pred_check_branch
          %760 = sbr.rel (%p758) target = $region68
        $region67: #{tpu_custom_call.1} parent=63 // pred_region
          %s761 = sand.u32 %s229, 1
          %s762 = scalar_lea.sflag [#allocation3], %s761
          %s763 = sand.u32 %s229, 1
          %s764 = scalar_lea.vmem [#allocation2], %s763
          %765 = dma.done %s762, 16
        $region68: #{tpu_custom_call.1} parent=63 // pred_fallthru
          _
        // Predicated region
        $region69: #{tpu_custom_call.1} parent=63 // pred_check
          %p766 = pneg %p270
        $region70: #{tpu_custom_call.1} parent=63 // pred_check_branch
          %768 = sbr.rel (%p766) target = $region72
        $region71: #{tpu_custom_call.1} parent=63 // pred_region
          %s769 = sand.u32 %s255, 1
          %s770 = scalar_lea.sflag [#allocation5], %s769
          %s771 = sand.u32 %s255, 1
          %s772 = scalar_lea.vmem [#allocation4], %s771
          %773 = dma.done %s770, 16
        $region72: #{tpu_custom_call.1} parent=63 // pred_fallthru
          _
      $region64: #{tpu_custom_call.1} parent=5 // pred_fallthru
        _
    $region6: #{tpu_custom_call.1} parent=1 // loop_footer
      %s26 = sadd.s32 1, %s22
    $region7: #{tpu_custom_call.1} parent=1 // loop_footer_branch
      %21 = sbr.rel target = $region3
    $region8: #{tpu_custom_call.1} parent=1 // loop_exit
      _
    %774 = vsyncpa [#allocation3], 1
    %s775 = scalar_lea.sflag [#allocation3], 1
    %776 = vsyncpa %s775, 1
    %777 = vsyncpa [#allocation5], 1
    %s778 = scalar_lea.sflag [#allocation5], 1
    %779 = vsyncpa %s778, 1

</llo_original>
